<compile_context>
chip_gen: v7x
topology: tpu7x:2x2x1
jax: 0.10.0
libtpu: 0.0.40
codegen_flags: <defaults>
</compile_context>

<pallas_src>
import jax
import jax.numpy as jnp
from jax import lax
from jax.experimental import pallas as pl
from jax.experimental.pallas import tpu as pltpu


def _round_up(n, m):
    return ((n + m - 1) // m) * m


def _largest_divisor(n, cap, step):
    """Largest multiple of `step` that divides n and is <= max(cap, step).

    Assumes n is a positive multiple of `step`.
    """
    t = max(step, min(n, (cap // step) * step))
    while n % t:
        t -= step
    return t


# ----------------------------------------------------------------------------
# Kernel 1 & 3: generic tiled matmul + bias (parallel over row/col tiles).
# Used for the hoisted input projection and the final vocab projection.
# ----------------------------------------------------------------------------
def matmul_bias_kernel(x_ref, w_ref, b_ref, o_ref):
    o_ref[...] = (jnp.dot(x_ref[...], w_ref[...],
                          preferred_element_type=jnp.float32)
                  + b_ref[...]).astype(o_ref.dtype)


def matmul_bias(x, w, b, *, tm_cap=256, tn_cap=512):
    """(M, K) @ (K, N) + (1, N) -> (M, N), M multiple of 8, K/N multiples of 128."""
    M, K = x.shape
    K2, N = w.shape
    assert K == K2 and b.shape == (1, N)
    tm = _largest_divisor(M, tm_cap, 8)
    tn = _largest_divisor(N, tn_cap, 128)
    return pl.pallas_call(
        matmul_bias_kernel,
        out_shape=jax.ShapeDtypeStruct((M, N), jnp.float32),
        grid_spec=pltpu.PrefetchScalarGridSpec(
            num_scalar_prefetch=0,
            grid=(M // tm, N // tn),
            in_specs=[
                pl.BlockSpec((tm, K), lambda i, j: (i, 0)),
                pl.BlockSpec((K, tn), lambda i, j: (0, j)),
                pl.BlockSpec((1, tn), lambda i, j: (0, j)),
            ],
            out_specs=pl.BlockSpec((tm, tn), lambda i, j: (i, j)),
        ),
        compiler_params=pltpu.CompilerParams(
            dimension_semantics=("parallel", "parallel")),
    )(x, w, b)


# ----------------------------------------------------------------------------
# Kernel 2: sequential RNN recurrence over pre-projected inputs.
# ----------------------------------------------------------------------------
def rnn_recurrence_kernel(xp_ref, whh_ref, h_ref):
    """One grid step processes a chunk of Tc timesteps.

    xp_ref : (Tc, Bp, Hp)  pre-projected inputs: x_t @ W_ih^T + (b_ih + b_hh)
    whh_ref: (Hp, Hp)      W_hh^T (constant across the grid)
    h_ref  : (Bp, Hp)      hidden state; output block resident across the grid
                           (constant index_map) -> acts as the carry.
    """
    c = pl.program_id(0)

    @pl.when(c == 0)
    def _():
        h_ref[...] = jnp.zeros_like(h_ref)

    whh = whh_ref[...]          # hoisted load, reused every timestep
    tc = xp_ref.shape[0]        # static chunk length

    def step(t, h):
        return jnp.tanh(xp_ref[t]
                        + jnp.dot(h, whh, preferred_element_type=jnp.float32))

    h_ref[...] = lax.fori_loop(0, tc, step, h_ref[...], unroll=(tc <= 32))


def rnn_recurrence(xp, whh_t, *, tc_cap=128):
    """xp: (T, Bp, Hp), whh_t: (Hp, Hp) -> final hidden state (Bp, Hp)."""
    T, Bp, Hp = xp.shape
    tc = _largest_divisor(T, tc_cap, 1)
    return pl.pallas_call(
        rnn_recurrence_kernel,
        out_shape=jax.ShapeDtypeStruct((Bp, Hp), jnp.float32),
        grid_spec=pltpu.PrefetchScalarGridSpec(
            num_scalar_prefetch=0,
            grid=(T // tc,),
            in_specs=[
                pl.BlockSpec((tc, Bp, Hp), lambda c: (c, 0, 0)),
                pl.BlockSpec((Hp, Hp), lambda c: (0, 0)),
            ],
            out_specs=pl.BlockSpec((Bp, Hp), lambda c: (0, 0)),
        ),
        compiler_params=pltpu.CompilerParams(
            dimension_semantics=("arbitrary",)),   # time is sequential
    )(xp, whh_t)


# ----------------------------------------------------------------------------
# Full forward pass.
# ----------------------------------------------------------------------------
def rnn_language_model_forward(x_ids, params):
    """x_ids: (B, T) int32 token indices. Returns (B, V) logits."""
    emb_table = params["embedding"]          # (V, E)
    w_ih = params["w_ih"]                    # (H, E)  PyTorch layout
    w_hh = params["w_hh"]                    # (H, H)
    b_ih = params["b_ih"]                    # (H,)
    b_hh = params["b_hh"]                    # (H,)
    w_fc = params["w_fc"]                    # (V, H)
    b_fc = params["b_fc"]                    # (V,)

    B, T = x_ids.shape
    V, E = emb_table.shape
    H = w_hh.shape[0]

    # (8, 128)-friendly padded sizes: full sublanes, lane-dense stores.
    Bp = _round_up(max(B, 8), 8)
    Ep = _round_up(E, 128)
    Hp = _round_up(H, 128)
    Vp = _round_up(V, 128)

    # Glue: embedding gather, directly time-major (no extra transpose).
    # TODO(synk): training-mode dropout (Bernoulli mask / (1-p)) not applied;
    # eval-mode forward semantics are used.
    embedded_tm = jnp.take(emb_table, x_ids.T, axis=0)             # (T, B, E)
    x_pad = jnp.pad(embedded_tm.astype(jnp.float32),
                    ((0, 0), (0, Bp - B), (0, Ep - E)))            # (T, Bp, Ep)
    x_flat = x_pad.reshape(T * Bp, Ep)

    # Pre-transposed, zero-padded weights; recurrence biases folded into one.
    wih_t = jnp.pad(w_ih.T, ((0, Ep - E), (0, Hp - H)))            # (Ep, Hp)
    whh_t = jnp.pad(w_hh.T, ((0, Hp - H), (0, Hp - H)))            # (Hp, Hp)
    wfc_t = jnp.pad(w_fc.T, ((0, Hp - H), (0, Vp - V)))            # (Hp, Vp)
    b_rnn = jnp.pad(b_ih + b_hh, (0, Hp - H)).reshape(1, Hp)       # folded bias
    b_out = jnp.pad(b_fc, (0, Vp - V)).reshape(1, Vp)

    # 1) Hoisted input projection: one big parallel matmul on the MXU.
    xp_flat = matmul_bias(x_flat, wih_t, b_rnn)                    # (T*Bp, Hp)
    xp = xp_flat.reshape(T, Bp, Hp)

    # 2) Sequential recurrence: h_t = tanh(xp_t + h_{t-1} @ W_hh^T).
    h_last = rnn_recurrence(xp, whh_t)                             # (Bp, Hp)

    # 3) Final vocab projection, tiled over the padded vocab dim.
    logits_pad = matmul_bias(h_last, wfc_t, b_out)                 # (Bp, Vp)

    return logits_pad[:B, :V]


def reference_forward(x_ids, params):
    """Pure-JAX reference (same math) for a correctness check."""
    embedded = params["embedding"][x_ids]             # (B, T, E)
    B, T, _ = embedded.shape
    H = params["w_hh"].shape[0]
    h = jnp.zeros((B, H), jnp.float32)
    for t in range(T):
        h = jnp.tanh(embedded[:, t, :] @ params["w_ih"].T + params["b_ih"]
                     + h @ params["w_hh"].T + params["b_hh"])
    return h @ params["w_fc"].T + params["b_fc"]


def init_params(key, vocab_size, embedding_dim, hidden_dim):
    ks = jax.random.split(key, 7)
    scale = 0.1
    return {
        "embedding": scale * jax.random.normal(ks[0], (vocab_size, embedding_dim), jnp.float32),
        "w_ih": scale * jax.random.normal(ks[1], (hidden_dim, embedding_dim), jnp.float32),
        "w_hh": scale * jax.random.normal(ks[2], (hidden_dim, hidden_dim), jnp.float32),
        "b_ih": scale * jax.random.normal(ks[3], (hidden_dim,), jnp.float32),
        "b_hh": scale * jax.random.normal(ks[4], (hidden_dim,), jnp.float32),
        "w_fc": scale * jax.random.normal(ks[5], (vocab_size, hidden_dim), jnp.float32),
        "b_fc": scale * jax.random.normal(ks[6], (vocab_size,), jnp.float32),
    }


if __name__ == "__main__":
    key = jax.random.PRNGKey(0)
    VOCAB = 27          # len(vocab_index), e.g. 26 letters + space
    EMB = 32            # embedding_dim
    HID = 32            # hidden_dim
    B, T = 2, 8         # batch, sequence length

    pkey, xkey = jax.random.split(key)
    params = init_params(pkey, VOCAB, EMB, HID)
    x_ids = jax.random.randint(xkey, (B, T), 0, VOCAB, dtype=jnp.int32)

    forward = jax.jit(rnn_language_model_forward)
    logits = forward(x_ids, params)
    logits = jax.block_until_ready(logits)

    ref = reference_forward(x_ids, params)
    assert logits.shape == (B, VOCAB)
    assert jnp.allclose(logits, ref, atol=1e-4, rtol=1e-4), "mismatch vs reference"

    print("KERNEL_OK")
</pallas_src>

<mosaic_0001>
module attributes {stable_mosaic.version = 11 : i64} {
  func.func @matmul_bias_kernel(%arg0: i32, %arg1: i32, %arg2: memref<64x128xf32, #tpu.memory_space<vmem>>, %arg3: memref<128x128xf32, #tpu.memory_space<vmem>>, %arg4: memref<1x128xf32, #tpu.memory_space<vmem>>, %arg5: memref<64x128xf32, #tpu.memory_space<vmem>>) attributes {dimension_semantics = [#tpu.dimension_semantics<parallel>, #tpu.dimension_semantics<parallel>], iteration_bounds = array<i64: 1, 1>, scalar_prefetch = 0 : i64, scratch_operands = 0 : i64, tpu.core_type = #tpu.core_type<tc>, window_params = [{transform_indices = @transform_0, window_bounds = array<i64: 64, 128>}, {transform_indices = @transform_1, window_bounds = array<i64: 128, 128>}, {transform_indices = @transform_2, window_bounds = array<i64: 1, 128>}, {transform_indices = @transform_3, window_bounds = array<i64: 64, 128>}]} {
    %c0 = arith.constant 0 : index
    %c0_0 = arith.constant 0 : index
    %0 = vector.load %arg2[%c0, %c0_0] : memref<64x128xf32, #tpu.memory_space<vmem>>, vector<64x128xf32>
    %c0_1 = arith.constant 0 : index
    %c0_2 = arith.constant 0 : index
    %1 = vector.load %arg3[%c0_1, %c0_2] : memref<128x128xf32, #tpu.memory_space<vmem>>, vector<128x128xf32>
    %cst = arith.constant dense<0.000000e+00> : vector<64x128xf32>
    %2 = tpu.matmul %0, %1, %cst {dimension_numbers = #tpu.dot_dimension_numbers<[1], [0], [0], [1], [0, 0, 1, 1], [], []>} : vector<64x128xf32>, vector<128x128xf32>, vector<64x128xf32> -> vector<64x128xf32>
    %c0_3 = arith.constant 0 : index
    %c0_4 = arith.constant 0 : index
    %3 = vector.load %arg4[%c0_3, %c0_4] : memref<1x128xf32, #tpu.memory_space<vmem>>, vector<1x128xf32>
    %4 = vector.broadcast %3 : vector<1x128xf32> to vector<64x128xf32>
    %5 = arith.addf %2, %4 : vector<64x128xf32>
    %c0_5 = arith.constant 0 : index
    %c0_6 = arith.constant 0 : index
    %6 = vector.load %arg5[%c0_5, %c0_6] : memref<64x128xf32, #tpu.memory_space<vmem>>, vector<64x128xf32>
    tpu.vector_store %arg5[%c0_5, %c0_6], %5 {strides = array<i32>} : memref<64x128xf32, #tpu.memory_space<vmem>>, vector<64x128xf32>,
    return
  }
  func.func @transform_0(%arg0: i32, %arg1: i32) -> (i32, i32) {
    %c0_i32 = arith.constant 0 : i32
    %c0_i32_0 = arith.constant 0 : i32
    return %arg0, %c0_i32 : i32, i32
  }
  func.func @transform_1(%arg0: i32, %arg1: i32) -> (i32, i32) {
    %c0_i32 = arith.constant 0 : i32
    %c0_i32_0 = arith.constant 0 : i32
    return %c0_i32, %arg1 : i32, i32
  }
  func.func @transform_2(%arg0: i32, %arg1: i32) -> (i32, i32) {
    %c0_i32 = arith.constant 0 : i32
    %c0_i32_0 = arith.constant 0 : i32
    return %c0_i32, %arg1 : i32, i32
  }
  func.func @transform_3(%arg0: i32, %arg1: i32) -> (i32, i32) {
    %c0_i32 = arith.constant 0 : i32
    return %arg0, %arg1 : i32, i32
  }
}

module attributes {stable_mosaic.version = 11 : i64} {
  func.func @rnn_recurrence_kernel(%arg0: i32, %arg1: memref<8x8x128xf32, #tpu.memory_space<vmem>>, %arg2: memref<128x128xf32, #tpu.memory_space<vmem>>, %arg3: memref<8x128xf32, #tpu.memory_space<vmem>>) attributes {dimension_semantics = [#tpu.dimension_semantics<arbitrary>], iteration_bounds = array<i64: 1>, scalar_prefetch = 0 : i64, scratch_operands = 0 : i64, tpu.core_type = #tpu.core_type<tc>, window_params = [{transform_indices = @transform_0, window_bounds = array<i64: 8, 8, 128>}, {pipeline_mode = #tpu.pipeline_mode<synchronous>, transform_indices = @transform_1, window_bounds = array<i64: 128, 128>}, {pipeline_mode = #tpu.pipeline_mode<synchronous>, transform_indices = @transform_2, window_bounds = array<i64: 8, 128>}]} {
    %c0_i32 = arith.constant 0 : i32
    %0 = arith.cmpi eq, %arg0, %c0_i32 : i32
    %1 = arith.extui %0 : i1 to i32
    %c0_i32_0 = arith.constant 0 : i32
    %2 = arith.cmpi ne, %1, %c0_i32_0 : i32
    scf.if %2 {
      %cst_30 = arith.constant 0.000000e+00 : f32
      %54 = vector.broadcast %cst_30 : f32 to vector<8x128xf32>
      %c0_31 = arith.constant 0 : index
      %c0_32 = arith.constant 0 : index
      %55 = vector.load %arg3[%c0_31, %c0_32] : memref<8x128xf32, #tpu.memory_space<vmem>>, vector<8x128xf32>
      tpu.vector_store %arg3[%c0_31, %c0_32], %54 {strides = array<i32>} : memref<8x128xf32, #tpu.memory_space<vmem>>, vector<8x128xf32>,
    } else {
    }
    %c0 = arith.constant 0 : index
    %c0_1 = arith.constant 0 : index
    %3 = vector.load %arg2[%c0, %c0_1] : memref<128x128xf32, #tpu.memory_space<vmem>>, vector<128x128xf32>
    %c0_2 = arith.constant 0 : index
    %c0_3 = arith.constant 0 : index
    %4 = vector.load %arg3[%c0_2, %c0_3] : memref<8x128xf32, #tpu.memory_space<vmem>>, vector<8x128xf32>
    %c0_i32_4 = arith.constant 0 : i32
    %5 = arith.index_cast %c0_i32_4 : i32 to index
    %c0_5 = arith.constant 0 : index
    %c0_6 = arith.constant 0 : index
    %6 = vector.load %arg1[%5, %c0_5, %c0_6] : memref<8x8x128xf32, #tpu.memory_space<vmem>>, vector<1x8x128xf32>
    %7 = vector.shape_cast %6 : vector<1x8x128xf32> to vector<8x128xf32>
    %cst = arith.constant dense<0.000000e+00> : vector<8x128xf32>
    %8 = tpu.matmul %4, %3, %cst {dimension_numbers = #tpu.dot_dimension_numbers<[1], [0], [0], [1], [0, 0, 1, 1], [], []>} : vector<8x128xf32>, vector<128x128xf32>, vector<8x128xf32> -> vector<8x128xf32>
    %9 = arith.addf %7, %8 : vector<8x128xf32>
    %10 = math.tanh %9 : vector<8x128xf32>
    %c1_i32 = arith.constant 1 : i32
    %11 = arith.index_cast %c1_i32 : i32 to index
    %c0_7 = arith.constant 0 : index
    %c0_8 = arith.constant 0 : index
    %12 = vector.load %arg1[%11, %c0_7, %c0_8] : memref<8x8x128xf32, #tpu.memory_space<vmem>>, vector<1x8x128xf32>
    %13 = vector.shape_cast %12 : vector<1x8x128xf32> to vector<8x128xf32>
    %cst_9 = arith.constant dense<0.000000e+00> : vector<8x128xf32>
    %14 = tpu.matmul %10, %3, %cst_9 {dimension_numbers = #tpu.dot_dimension_numbers<[1], [0], [0], [1], [0, 0, 1, 1], [], []>} : vector<8x128xf32>, vector<128x128xf32>, vector<8x128xf32> -> vector<8x128xf32>
    %15 = arith.addf %13, %14 : vector<8x128xf32>
    %16 = math.tanh %15 : vector<8x128xf32>
    %c2_i32 = arith.constant 2 : i32
    %17 = arith.index_cast %c2_i32 : i32 to index
    %c0_10 = arith.constant 0 : index
    %c0_11 = arith.constant 0 : index
    %18 = vector.load %arg1[%17, %c0_10, %c0_11] : memref<8x8x128xf32, #tpu.memory_space<vmem>>, vector<1x8x128xf32>
    %19 = vector.shape_cast %18 : vector<1x8x128xf32> to vector<8x128xf32>
    %cst_12 = arith.constant dense<0.000000e+00> : vector<8x128xf32>
    %20 = tpu.matmul %16, %3, %cst_12 {dimension_numbers = #tpu.dot_dimension_numbers<[1], [0], [0], [1], [0, 0, 1, 1], [], []>} : vector<8x128xf32>, vector<128x128xf32>, vector<8x128xf32> -> vector<8x128xf32>
    %21 = arith.addf %19, %20 : vector<8x128xf32>
    %22 = math.tanh %21 : vector<8x128xf32>
    %c3_i32 = arith.constant 3 : i32
    %23 = arith.index_cast %c3_i32 : i32 to index
    %c0_13 = arith.constant 0 : index
    %c0_14 = arith.constant 0 : index
    %24 = vector.load %arg1[%23, %c0_13, %c0_14] : memref<8x8x128xf32, #tpu.memory_space<vmem>>, vector<1x8x128xf32>
    %25 = vector.shape_cast %24 : vector<1x8x128xf32> to vector<8x128xf32>
    %cst_15 = arith.constant dense<0.000000e+00> : vector<8x128xf32>
    %26 = tpu.matmul %22, %3, %cst_15 {dimension_numbers = #tpu.dot_dimension_numbers<[1], [0], [0], [1], [0, 0, 1, 1], [], []>} : vector<8x128xf32>, vector<128x128xf32>, vector<8x128xf32> -> vector<8x128xf32>
    %27 = arith.addf %25, %26 : vector<8x128xf32>
    %28 = math.tanh %27 : vector<8x128xf32>
    %c4_i32 = arith.constant 4 : i32
    %29 = arith.index_cast %c4_i32 : i32 to index
    %c0_16 = arith.constant 0 : index
    %c0_17 = arith.constant 0 : index
    %30 = vector.load %arg1[%29, %c0_16, %c0_17] : memref<8x8x128xf32, #tpu.memory_space<vmem>>, vector<1x8x128xf32>
    %31 = vector.shape_cast %30 : vector<1x8x128xf32> to vector<8x128xf32>
    %cst_18 = arith.constant dense<0.000000e+00> : vector<8x128xf32>
    %32 = tpu.matmul %28, %3, %cst_18 {dimension_numbers = #tpu.dot_dimension_numbers<[1], [0], [0], [1], [0, 0, 1, 1], [], []>} : vector<8x128xf32>, vector<128x128xf32>, vector<8x128xf32> -> vector<8x128xf32>
    %33 = arith.addf %31, %32 : vector<8x128xf32>
    %34 = math.tanh %33 : vector<8x128xf32>
    %c5_i32 = arith.constant 5 : i32
    %35 = arith.index_cast %c5_i32 : i32 to index
    %c0_19 = arith.constant 0 : index
    %c0_20 = arith.constant 0 : index
    %36 = vector.load %arg1[%35, %c0_19, %c0_20] : memref<8x8x128xf32, #tpu.memory_space<vmem>>, vector<1x8x128xf32>
    %37 = vector.shape_cast %36 : vector<1x8x128xf32> to vector<8x128xf32>
    %cst_21 = arith.constant dense<0.000000e+00> : vector<8x128xf32>
    %38 = tpu.matmul %34, %3, %cst_21 {dimension_numbers = #tpu.dot_dimension_numbers<[1], [0], [0], [1], [0, 0, 1, 1], [], []>} : vector<8x128xf32>, vector<128x128xf32>, vector<8x128xf32> -> vector<8x128xf32>
    %39 = arith.addf %37, %38 : vector<8x128xf32>
    %40 = math.tanh %39 : vector<8x128xf32>
    %c6_i32 = arith.constant 6 : i32
    %41 = arith.index_cast %c6_i32 : i32 to index
    %c0_22 = arith.constant 0 : index
    %c0_23 = arith.constant 0 : index
    %42 = vector.load %arg1[%41, %c0_22, %c0_23] : memref<8x8x128xf32, #tpu.memory_space<vmem>>, vector<1x8x128xf32>
    %43 = vector.shape_cast %42 : vector<1x8x128xf32> to vector<8x128xf32>
    %cst_24 = arith.constant dense<0.000000e+00> : vector<8x128xf32>
    %44 = tpu.matmul %40, %3, %cst_24 {dimension_numbers = #tpu.dot_dimension_numbers<[1], [0], [0], [1], [0, 0, 1, 1], [], []>} : vector<8x128xf32>, vector<128x128xf32>, vector<8x128xf32> -> vector<8x128xf32>
    %45 = arith.addf %43, %44 : vector<8x128xf32>
    %46 = math.tanh %45 : vector<8x128xf32>
    %c7_i32 = arith.constant 7 : i32
    %47 = arith.index_cast %c7_i32 : i32 to index
    %c0_25 = arith.constant 0 : index
    %c0_26 = arith.constant 0 : index
    %48 = vector.load %arg1[%47, %c0_25, %c0_26] : memref<8x8x128xf32, #tpu.memory_space<vmem>>, vector<1x8x128xf32>
    %49 = vector.shape_cast %48 : vector<1x8x128xf32> to vector<8x128xf32>
    %cst_27 = arith.constant dense<0.000000e+00> : vector<8x128xf32>
    %50 = tpu.matmul %46, %3, %cst_27 {dimension_numbers = #tpu.dot_dimension_numbers<[1], [0], [0], [1], [0, 0, 1, 1], [], []>} : vector<8x128xf32>, vector<128x128xf32>, vector<8x128xf32> -> vector<8x128xf32>
    %51 = arith.addf %49, %50 : vector<8x128xf32>
    %52 = math.tanh %51 : vector<8x128xf32>
    %c8_i32 = arith.constant 8 : i32
    %c0_28 = arith.constant 0 : index
    %c0_29 = arith.constant 0 : index
    %53 = vector.load %arg3[%c0_28, %c0_29] : memref<8x128xf32, #tpu.memory_space<vmem>>, vector<8x128xf32>
    tpu.vector_store %arg3[%c0_28, %c0_29], %52 {strides = array<i32>} : memref<8x128xf32, #tpu.memory_space<vmem>>, vector<8x128xf32>,
    return
  }
  func.func @transform_0(%arg0: i32) -> (i32, i32, i32) {
    %c0_i32 = arith.constant 0 : i32
    %c0_i32_0 = arith.constant 0 : i32
    %c0_i32_1 = arith.constant 0 : i32
    return %arg0, %c0_i32, %c0_i32_0 : i32, i32, i32
  }
  func.func @transform_1(%arg0: i32) -> (i32, i32) {
    %c0_i32 = arith.constant 0 : i32
    %c0_i32_0 = arith.constant 0 : i32
    %c0_i32_1 = arith.constant 0 : i32
    return %c0_i32, %c0_i32_0 : i32, i32
  }
  func.func @transform_2(%arg0: i32) -> (i32, i32) {
    %c0_i32 = arith.constant 0 : i32
    %c0_i32_0 = arith.constant 0 : i32
    %c0_i32_1 = arith.constant 0 : i32
    return %c0_i32, %c0_i32_0 : i32, i32
  }
}

module attributes {stable_mosaic.version = 11 : i64} {
  func.func @matmul_bias_kernel(%arg0: i32, %arg1: i32, %arg2: memref<8x128xf32, #tpu.memory_space<vmem>>, %arg3: memref<128x128xf32, #tpu.memory_space<vmem>>, %arg4: memref<1x128xf32, #tpu.memory_space<vmem>>, %arg5: memref<8x128xf32, #tpu.memory_space<vmem>>) attributes {dimension_semantics = [#tpu.dimension_semantics<parallel>, #tpu.dimension_semantics<parallel>], iteration_bounds = array<i64: 1, 1>, scalar_prefetch = 0 : i64, scratch_operands = 0 : i64, tpu.core_type = #tpu.core_type<tc>, window_params = [{transform_indices = @transform_0, window_bounds = array<i64: 8, 128>}, {transform_indices = @transform_1, window_bounds = array<i64: 128, 128>}, {transform_indices = @transform_2, window_bounds = array<i64: 1, 128>}, {transform_indices = @transform_3, window_bounds = array<i64: 8, 128>}]} {
    %c0 = arith.constant 0 : index
    %c0_0 = arith.constant 0 : index
    %0 = vector.load %arg2[%c0, %c0_0] : memref<8x128xf32, #tpu.memory_space<vmem>>, vector<8x128xf32>
    %c0_1 = arith.constant 0 : index
    %c0_2 = arith.constant 0 : index
    %1 = vector.load %arg3[%c0_1, %c0_2] : memref<128x128xf32, #tpu.memory_space<vmem>>, vector<128x128xf32>
    %cst = arith.constant dense<0.000000e+00> : vector<8x128xf32>
    %2 = tpu.matmul %0, %1, %cst {dimension_numbers = #tpu.dot_dimension_numbers<[1], [0], [0], [1], [0, 0, 1, 1], [], []>} : vector<8x128xf32>, vector<128x128xf32>, vector<8x128xf32> -> vector<8x128xf32>
    %c0_3 = arith.constant 0 : index
    %c0_4 = arith.constant 0 : index
    %3 = vector.load %arg4[%c0_3, %c0_4] : memref<1x128xf32, #tpu.memory_space<vmem>>, vector<1x128xf32>
    %4 = vector.broadcast %3 : vector<1x128xf32> to vector<8x128xf32>
    %5 = arith.addf %2, %4 : vector<8x128xf32>
    %c0_5 = arith.constant 0 : index
    %c0_6 = arith.constant 0 : index
    %6 = vector.load %arg5[%c0_5, %c0_6] : memref<8x128xf32, #tpu.memory_space<vmem>>, vector<8x128xf32>
    tpu.vector_store %arg5[%c0_5, %c0_6], %5 {strides = array<i32>} : memref<8x128xf32, #tpu.memory_space<vmem>>, vector<8x128xf32>,
    return
  }
  func.func @transform_0(%arg0: i32, %arg1: i32) -> (i32, i32) {
    %c0_i32 = arith.constant 0 : i32
    %c0_i32_0 = arith.constant 0 : i32
    return %arg0, %c0_i32 : i32, i32
  }
  func.func @transform_1(%arg0: i32, %arg1: i32) -> (i32, i32) {
    %c0_i32 = arith.constant 0 : i32
    %c0_i32_0 = arith.constant 0 : i32
    return %c0_i32, %arg1 : i32, i32
  }
  func.func @transform_2(%arg0: i32, %arg1: i32) -> (i32, i32) {
    %c0_i32 = arith.constant 0 : i32
    %c0_i32_0 = arith.constant 0 : i32
    return %c0_i32, %arg1 : i32, i32
  }
  func.func @transform_3(%arg0: i32, %arg1: i32) -> (i32, i32) {
    %c0_i32 = arith.constant 0 : i32
    return %arg0, %arg1 : i32, i32
  }
}

</mosaic_0001>

<llo_original>
// kernel: rnn_language_model_forward.3
$region0: #{rnn_language_model_forward.3}
  #allocation0 [shape = 'u32[]', space=smem, size = 0x4, offset = 0x4, fixed_abs, tag = 'smem constant byte address 0x4 - core index']
  #allocation1 [shape = 'u32[144,128]{1,0:T(1,128)}', space=vmem, size = 0x12000, scoped, tag = 'internal scratch']
  %s0 = inlined_call_operand.vmem [shape: f32[64,128], index: 0, kind: input, shape index: {}]
  %s1 = inlined_call_operand.vmem [shape: f32[128,128], index: 1, kind: input, shape index: {}]
  %s2 = inlined_call_operand.vmem [shape: f32[1,128], index: 2, kind: input, shape index: {}]
  %s3 = inlined_call_operand.vmem [shape: f32[64,128], index: 3, kind: output, shape index: {}]
  %s4 = sld [smem:[#allocation0]]
  $region22: #{rnn_language_model_forward.3} parent=0
    _
  %s6 = ssub.s32 1, %s4
  %s7 = scalar_select 0, %s6, %s4
  // Predicated region
  $region2: #{rnn_language_model_forward.3} parent=0 // pred_check
    _
  $region3: #{rnn_language_model_forward.3} parent=0 // pred_check_branch
    %9 = sbr.rel (0) target = $region5
  $region4: #{rnn_language_model_forward.3} parent=0 // pred_region
    _
  $region5: #{rnn_language_model_forward.3} parent=0 // pred_fallthru
    _
  // Predicated region
  $region6: #{rnn_language_model_forward.3} parent=0 // pred_check
    _
  $region7: #{rnn_language_model_forward.3} parent=0 // pred_check_branch
    %11 = sbr.rel (0) target = $region9
  $region8: #{rnn_language_model_forward.3} parent=0 // pred_region
    _
  $region9: #{rnn_language_model_forward.3} parent=0 // pred_fallthru
    _
  // Predicated region
  $region10: #{rnn_language_model_forward.3} parent=0 // pred_check
    _
  $region11: #{rnn_language_model_forward.3} parent=0 // pred_check_branch
    %13 = sbr.rel (0) target = $region13
  $region12: #{rnn_language_model_forward.3} parent=0 // pred_region
    _
  $region13: #{rnn_language_model_forward.3} parent=0 // pred_fallthru
    _
  %v14 = vld [vmem:[%s0] sm:$0xff]
  %v15 = vld [vmem:[%s0 + $0x8] sm:$0xff]
  %v16 = vld [vmem:[%s0 + $0x10] sm:$0xff]
  %v17 = vld [vmem:[%s0 + $0x18] sm:$0xff]
  %v18 = vld [vmem:[%s0 + $0x20] sm:$0xff]
  %v19 = vld [vmem:[%s0 + $0x28] sm:$0xff]
  %v20 = vld [vmem:[%s0 + $0x30] sm:$0xff]
  %v21 = vld [vmem:[%s0 + $0x38] sm:$0xff]
  %v22 = vld [vmem:[%s1] sm:$0xff]
  %v23 = vld [vmem:[%s1 + $0x8] sm:$0xff]
  %v24 = vld [vmem:[%s1 + $0x10] sm:$0xff]
  %v25 = vld [vmem:[%s1 + $0x18] sm:$0xff]
  %v26 = vld [vmem:[%s1 + $0x20] sm:$0xff]
  %v27 = vld [vmem:[%s1 + $0x28] sm:$0xff]
  %v28 = vld [vmem:[%s1 + $0x30] sm:$0xff]
  %v29 = vld [vmem:[%s1 + $0x38] sm:$0xff]
  %v30 = vld [vmem:[%s1 + $0x40] sm:$0xff]
  %v31 = vld [vmem:[%s1 + $0x48] sm:$0xff]
  %v32 = vld [vmem:[%s1 + $0x50] sm:$0xff]
  %v33 = vld [vmem:[%s1 + $0x58] sm:$0xff]
  %v34 = vld [vmem:[%s1 + $0x60] sm:$0xff]
  %v35 = vld [vmem:[%s1 + $0x68] sm:$0xff]
  %v36 = vld [vmem:[%s1 + $0x70] sm:$0xff]
  %v37 = vld [vmem:[%s1 + $0x78] sm:$0xff]
  %v38 = vld [vmem:[%s2] sm:$0x1]
  %v40 = vlaneseq
  %v41 = vshrl.u32 %v40, 7
  %v42 = vsub.s32 0, %v41
  %v43 = vrot.slane %v38, %v42
  %45 = vmatprep.subr.mxu0 0.0
  %46 = vmatpush1.msra.mxu0 %v22
  %47 = vmatprep.subr.mxu0 0.0
  %48 = vmatpush1.msra.mxu0 %v23
  %49 = vmatprep.subr.mxu0 0.0
  %50 = vmatpush1.msra.mxu0 %v24
  %51 = vmatprep.subr.mxu0 0.0
  %52 = vmatpush1.msra.mxu0 %v25
  %53 = vmatprep.subr.mxu0 0.0
  %54 = vmatpush1.msra.mxu0 %v26
  %55 = vmatprep.subr.mxu0 0.0
  %56 = vmatpush1.msra.mxu0 %v27
  %57 = vmatprep.subr.mxu0 0.0
  %58 = vmatpush1.msra.mxu0 %v28
  %59 = vmatprep.subr.mxu0 0.0
  %60 = vmatpush1.msra.mxu0 %v29
  %61 = vmatprep.subr.mxu0 0.0
  %62 = vmatpush1.msra.mxu0 %v30
  %63 = vmatprep.subr.mxu0 0.0
  %64 = vmatpush1.msra.mxu0 %v31
  %65 = vmatprep.subr.mxu0 0.0
  %66 = vmatpush1.msra.mxu0 %v32
  %67 = vmatprep.subr.mxu0 0.0
  %68 = vmatpush1.msra.mxu0 %v33
  %69 = vmatprep.subr.mxu0 0.0
  %70 = vmatpush1.msra.mxu0 %v34
  %71 = vmatprep.subr.mxu0 0.0
  %72 = vmatpush1.msra.mxu0 %v35
  %73 = vmatprep.subr.mxu0 0.0
  %74 = vmatpush1.msra.mxu0 %v36
  %75 = vmatprep.subr.mxu0 0.0
  %76 = vmatpush1.msra.mxu0 %v37
  %77 = vmatprep.subr.mxu0 0.0
  %78 = vmatpush1.msra.mxu0 0.0
  %79 = vmatprep.subr.mxu0 0.0
  %80 = vmatpush1.msra.mxu0 0.0
  %81 = vmatprep.subr.mxu0 0.0
  %82 = vmatpush1.msra.mxu0 0.0
  %83 = vmatprep.subr.mxu0 0.0
  %84 = vmatpush1.msra.mxu0 0.0
  %85 = vmatprep.subr.mxu0 0.0
  %86 = vmatpush1.msra.mxu0 0.0
  %87 = vmatprep.subr.mxu0 0.0
  %88 = vmatpush1.msra.mxu0 0.0
  %89 = vmatprep.subr.mxu0 0.0
  %90 = vmatpush1.msra.mxu0 0.0
  %91 = vmatprep.subr.mxu0 0.0
  %92 = vmatpush1.msra.mxu0 0.0
  %93 = vmatprep.subr.mxu0 0.0
  %94 = vmatpush1.msra.mxu0 0.0
  %95 = vmatprep.subr.mxu0 0.0
  %96 = vmatpush1.msra.mxu0 0.0
  %97 = vmatprep.subr.mxu0 0.0
  %98 = vmatpush1.msra.mxu0 0.0
  %99 = vmatprep.subr.mxu0 0.0
  %100 = vmatpush1.msra.mxu0 0.0
  %101 = vmatprep.subr.mxu0 0.0
  %102 = vmatpush1.msra.mxu0 0.0
  %103 = vmatprep.subr.mxu0 0.0
  %104 = vmatpush1.msra.mxu0 0.0
  %105 = vmatprep.subr.mxu0 0.0
  %106 = vmatpush1.msra.mxu0 0.0
  %107 = vmatprep.subr.mxu0 0.0
  %108 = vmatpush1.msra.mxu0 0.0
  %109 = vmatprep.mubr.f32.mxu0 0.0
  %110 = vmatmul.mubr.f32.gmra.mrb[0].mxu0 %v14
  %v111 = vpop.f32.mrb[0].mxu0
  %v112 = vadd.f32 %v43, %v111
  %v113 = vpop.f32.mrb[0].mxu0
  %114 = vmatprep.mubr.f32.mxu0 0.0
  %115 = vmatmul.mubr.f32.gmra.mrb[0].mxu0 %v15
  %v116 = vpop.f32.mrb[0].mxu0
  %v117 = vadd.f32 %v43, %v116
  %v118 = vpop.f32.mrb[0].mxu0
  %119 = vmatprep.mubr.f32.mxu0 0.0
  %120 = vmatmul.mubr.f32.gmra.mrb[0].mxu0 %v16
  %v121 = vpop.f32.mrb[0].mxu0
  %v122 = vadd.f32 %v43, %v121
  %v123 = vpop.f32.mrb[0].mxu0
  %124 = vmatprep.mubr.f32.mxu0 0.0
  %125 = vmatmul.mubr.f32.gmra.mrb[0].mxu0 %v17
  %v126 = vpop.f32.mrb[0].mxu0
  %v127 = vadd.f32 %v43, %v126
  %v128 = vpop.f32.mrb[0].mxu0
  %129 = vmatprep.mubr.f32.mxu0 0.0
  %130 = vmatmul.mubr.f32.gmra.mrb[0].mxu0 %v18
  %v131 = vpop.f32.mrb[0].mxu0
  %v132 = vadd.f32 %v43, %v131
  %v133 = vpop.f32.mrb[0].mxu0
  %134 = vmatprep.mubr.f32.mxu0 0.0
  %135 = vmatmul.mubr.f32.gmra.mrb[0].mxu0 %v19
  %v136 = vpop.f32.mrb[0].mxu0
  %v137 = vadd.f32 %v43, %v136
  %v138 = vpop.f32.mrb[0].mxu0
  %139 = vmatprep.mubr.f32.mxu0 0.0
  %140 = vmatmul.mubr.f32.gmra.mrb[0].mxu0 %v20
  %v141 = vpop.f32.mrb[0].mxu0
  %v142 = vadd.f32 %v43, %v141
  %v143 = vpop.f32.mrb[0].mxu0
  %144 = vmatprep.mubr.f32.mxu0 0.0
  %145 = vmatmul.mubr.f32.gmra.mrb[0].mxu0 %v21
  %v146 = vpop.f32.mrb[0].mxu0
  %v147 = vadd.f32 %v43, %v146
  %v148 = vpop.f32.mrb[0].mxu0
  %149 = vdwg.mxu0
  %150 = vst [vmem:[%s3] sm:$0xff] %v112
  %151 = vst [vmem:[%s3 + $0x8] sm:$0xff] %v117
  %152 = vst [vmem:[%s3 + $0x10] sm:$0xff] %v122
  %153 = vst [vmem:[%s3 + $0x18] sm:$0xff] %v127
  %154 = vst [vmem:[%s3 + $0x20] sm:$0xff] %v132
  %155 = vst [vmem:[%s3 + $0x28] sm:$0xff] %v137
  %156 = vst [vmem:[%s3 + $0x30] sm:$0xff] %v142
  %157 = vst [vmem:[%s3 + $0x38] sm:$0xff] %v147
  // Predicated region
  $region14: #{rnn_language_model_forward.3} parent=0 // pred_check
    _
  $region15: #{rnn_language_model_forward.3} parent=0 // pred_check_branch
    %159 = sbr.rel (0) target = $region17
  $region16: #{rnn_language_model_forward.3} parent=0 // pred_region
    _
  $region17: #{rnn_language_model_forward.3} parent=0 // pred_fallthru
    _
  // Predicated region
  $region18: #{rnn_language_model_forward.3} parent=0 // pred_check
    _
  $region19: #{rnn_language_model_forward.3} parent=0 // pred_check_branch
    %161 = sbr.rel (0) target = $region21
  $region20: #{rnn_language_model_forward.3} parent=0 // pred_region
    _
  $region21: #{rnn_language_model_forward.3} parent=0 // pred_fallthru
    _

// kernel: rnn_language_model_forward.5
$region0: #{rnn_language_model_forward.5}
  #allocation0 [shape = 'u32[]', space=smem, size = 0x4, offset = 0x4, fixed_abs, tag = 'smem constant byte address 0x4 - core index']
  #allocation1 [shape = 'u32[144,128]{1,0:T(1,128)}', space=vmem, size = 0x12000, scoped, tag = 'internal scratch']
  %s0 = inlined_call_operand.vmem [shape: f32[8,128], index: 0, kind: input, shape index: {}]
  %s1 = inlined_call_operand.vmem [shape: f32[128,128], index: 1, kind: input, shape index: {}]
  %s2 = inlined_call_operand.vmem [shape: f32[1,128], index: 2, kind: input, shape index: {}]
  %s3 = inlined_call_operand.vmem [shape: f32[8,128], index: 3, kind: output, shape index: {}]
  %s4 = sld [smem:[#allocation0]]
  $region22: #{rnn_language_model_forward.5} parent=0
    _
  %s6 = ssub.s32 1, %s4
  %s7 = scalar_select 0, %s6, %s4
  // Predicated region
  $region2: #{rnn_language_model_forward.5} parent=0 // pred_check
    _
  $region3: #{rnn_language_model_forward.5} parent=0 // pred_check_branch
    %9 = sbr.rel (0) target = $region5
  $region4: #{rnn_language_model_forward.5} parent=0 // pred_region
    _
  $region5: #{rnn_language_model_forward.5} parent=0 // pred_fallthru
    _
  // Predicated region
  $region6: #{rnn_language_model_forward.5} parent=0 // pred_check
    _
  $region7: #{rnn_language_model_forward.5} parent=0 // pred_check_branch
    %11 = sbr.rel (0) target = $region9
  $region8: #{rnn_language_model_forward.5} parent=0 // pred_region
    _
  $region9: #{rnn_language_model_forward.5} parent=0 // pred_fallthru
    _
  // Predicated region
  $region10: #{rnn_language_model_forward.5} parent=0 // pred_check
    _
  $region11: #{rnn_language_model_forward.5} parent=0 // pred_check_branch
    %13 = sbr.rel (0) target = $region13
  $region12: #{rnn_language_model_forward.5} parent=0 // pred_region
    _
  $region13: #{rnn_language_model_forward.5} parent=0 // pred_fallthru
    _
  %v14 = vld [vmem:[%s0] sm:$0xff]
  %v15 = vld [vmem:[%s1] sm:$0xff]
  %v16 = vld [vmem:[%s1 + $0x8] sm:$0xff]
  %v17 = vld [vmem:[%s1 + $0x10] sm:$0xff]
  %v18 = vld [vmem:[%s1 + $0x18] sm:$0xff]
  %v19 = vld [vmem:[%s1 + $0x20] sm:$0xff]
  %v20 = vld [vmem:[%s1 + $0x28] sm:$0xff]
  %v21 = vld [vmem:[%s1 + $0x30] sm:$0xff]
  %v22 = vld [vmem:[%s1 + $0x38] sm:$0xff]
  %v23 = vld [vmem:[%s1 + $0x40] sm:$0xff]
  %v24 = vld [vmem:[%s1 + $0x48] sm:$0xff]
  %v25 = vld [vmem:[%s1 + $0x50] sm:$0xff]
  %v26 = vld [vmem:[%s1 + $0x58] sm:$0xff]
  %v27 = vld [vmem:[%s1 + $0x60] sm:$0xff]
  %v28 = vld [vmem:[%s1 + $0x68] sm:$0xff]
  %v29 = vld [vmem:[%s1 + $0x70] sm:$0xff]
  %v30 = vld [vmem:[%s1 + $0x78] sm:$0xff]
  %v31 = vld [vmem:[%s2] sm:$0x1]
  %v33 = vlaneseq
  %v34 = vshrl.u32 %v33, 7
  %v35 = vsub.s32 0, %v34
  %v36 = vrot.slane %v31, %v35
  %38 = vmatprep.subr.mxu0 0.0
  %39 = vmatpush1.msra.mxu0 %v15
  %40 = vmatprep.subr.mxu0 0.0
  %41 = vmatpush1.msra.mxu0 %v16
  %42 = vmatprep.subr.mxu0 0.0
  %43 = vmatpush1.msra.mxu0 %v17
  %44 = vmatprep.subr.mxu0 0.0
  %45 = vmatpush1.msra.mxu0 %v18
  %46 = vmatprep.subr.mxu0 0.0
  %47 = vmatpush1.msra.mxu0 %v19
  %48 = vmatprep.subr.mxu0 0.0
  %49 = vmatpush1.msra.mxu0 %v20
  %50 = vmatprep.subr.mxu0 0.0
  %51 = vmatpush1.msra.mxu0 %v21
  %52 = vmatprep.subr.mxu0 0.0
  %53 = vmatpush1.msra.mxu0 %v22
  %54 = vmatprep.subr.mxu0 0.0
  %55 = vmatpush1.msra.mxu0 %v23
  %56 = vmatprep.subr.mxu0 0.0
  %57 = vmatpush1.msra.mxu0 %v24
  %58 = vmatprep.subr.mxu0 0.0
  %59 = vmatpush1.msra.mxu0 %v25
  %60 = vmatprep.subr.mxu0 0.0
  %61 = vmatpush1.msra.mxu0 %v26
  %62 = vmatprep.subr.mxu0 0.0
  %63 = vmatpush1.msra.mxu0 %v27
  %64 = vmatprep.subr.mxu0 0.0
  %65 = vmatpush1.msra.mxu0 %v28
  %66 = vmatprep.subr.mxu0 0.0
  %67 = vmatpush1.msra.mxu0 %v29
  %68 = vmatprep.subr.mxu0 0.0
  %69 = vmatpush1.msra.mxu0 %v30
  %70 = vmatprep.subr.mxu0 0.0
  %71 = vmatpush1.msra.mxu0 0.0
  %72 = vmatprep.subr.mxu0 0.0
  %73 = vmatpush1.msra.mxu0 0.0
  %74 = vmatprep.subr.mxu0 0.0
  %75 = vmatpush1.msra.mxu0 0.0
  %76 = vmatprep.subr.mxu0 0.0
  %77 = vmatpush1.msra.mxu0 0.0
  %78 = vmatprep.subr.mxu0 0.0
  %79 = vmatpush1.msra.mxu0 0.0
  %80 = vmatprep.subr.mxu0 0.0
  %81 = vmatpush1.msra.mxu0 0.0
  %82 = vmatprep.subr.mxu0 0.0
  %83 = vmatpush1.msra.mxu0 0.0
  %84 = vmatprep.subr.mxu0 0.0
  %85 = vmatpush1.msra.mxu0 0.0
  %86 = vmatprep.subr.mxu0 0.0
  %87 = vmatpush1.msra.mxu0 0.0
  %88 = vmatprep.subr.mxu0 0.0
  %89 = vmatpush1.msra.mxu0 0.0
  %90 = vmatprep.subr.mxu0 0.0
  %91 = vmatpush1.msra.mxu0 0.0
  %92 = vmatprep.subr.mxu0 0.0
  %93 = vmatpush1.msra.mxu0 0.0
  %94 = vmatprep.subr.mxu0 0.0
  %95 = vmatpush1.msra.mxu0 0.0
  %96 = vmatprep.subr.mxu0 0.0
  %97 = vmatpush1.msra.mxu0 0.0
  %98 = vmatprep.subr.mxu0 0.0
  %99 = vmatpush1.msra.mxu0 0.0
  %100 = vmatprep.subr.mxu0 0.0
  %101 = vmatpush1.msra.mxu0 0.0
  %102 = vmatprep.mubr.f32.mxu0 0.0
  %103 = vmatmul.mubr.f32.gmra.mrb[0].mxu0 %v14
  %v104 = vpop.f32.mrb[0].mxu0
  %v105 = vadd.f32 %v36, %v104
  %v106 = vpop.f32.mrb[0].mxu0
  %107 = vdwg.mxu0
  %108 = vst [vmem:[%s3] sm:$0xff] %v105
  // Predicated region
  $region14: #{rnn_language_model_forward.5} parent=0 // pred_check
    _
  $region15: #{rnn_language_model_forward.5} parent=0 // pred_check_branch
    %110 = sbr.rel (0) target = $region17
  $region16: #{rnn_language_model_forward.5} parent=0 // pred_region
    _
  $region17: #{rnn_language_model_forward.5} parent=0 // pred_fallthru
    _
  // Predicated region
  $region18: #{rnn_language_model_forward.5} parent=0 // pred_check
    _
  $region19: #{rnn_language_model_forward.5} parent=0 // pred_check_branch
    %112 = sbr.rel (0) target = $region21
  $region20: #{rnn_language_model_forward.5} parent=0 // pred_region
    _
  $region21: #{rnn_language_model_forward.5} parent=0 // pred_fallthru
    _

// kernel: rnn_language_model_forward.4
$region0: #{rnn_language_model_forward.4}
  #allocation0 [shape = 'u32[]', space=smem, size = 0x4, offset = 0x4, fixed_abs, tag = 'smem constant byte address 0x4 - core index']
  #allocation1 [shape = 'u32[144,128]{1,0:T(1,128)}', space=vmem, size = 0x12000, scoped, tag = 'internal scratch']
  %s0 = inlined_call_operand.vmem [shape: f32[8,8,128], index: 0, kind: input, shape index: {}]
  %s1 = inlined_call_operand.vmem [shape: f32[128,128], index: 1, kind: input, shape index: {}]
  %s2 = inlined_call_operand.vmem [shape: f32[8,128], index: 2, kind: output, shape index: {}]
  %s3 = sld [smem:[#allocation0]]
  $region22: #{rnn_language_model_forward.4} parent=0
    _
  %s5 = ssub.s32 1, %s3
  %s6 = scalar_select 0, %s5, %s3
  // Predicated region
  $region2: #{rnn_language_model_forward.4} parent=0 // pred_check
    _
  $region3: #{rnn_language_model_forward.4} parent=0 // pred_check_branch
    %8 = sbr.rel (0) target = $region5
  $region4: #{rnn_language_model_forward.4} parent=0 // pred_region
    _
  $region5: #{rnn_language_model_forward.4} parent=0 // pred_fallthru
    _
  // Predicated region
  $region6: #{rnn_language_model_forward.4} parent=0 // pred_check
    _
  $region7: #{rnn_language_model_forward.4} parent=0 // pred_check_branch
    %10 = sbr.rel (0) target = $region9
  $region8: #{rnn_language_model_forward.4} parent=0 // pred_region
    _
  $region9: #{rnn_language_model_forward.4} parent=0 // pred_fallthru
    _
  %p11 = scmp.eq.s32.totalorder 0, 0
  // Predicated region
  $region10: #{rnn_language_model_forward.4} parent=0 // pred_check
    %p12 = pneg %p11
  $region11: #{rnn_language_model_forward.4} parent=0 // pred_check_branch
    %14 = sbr.rel (%p12) target = $region13
  $region12: #{rnn_language_model_forward.4} parent=0 // pred_region
    %15 = vst [vmem:[%s2] sm:$0xff] 0.0
  $region13: #{rnn_language_model_forward.4} parent=0 // pred_fallthru
    _
  %v16 = vld [vmem:[%s1] sm:$0xff]
  %v17 = vld [vmem:[%s1 + $0x8] sm:$0xff]
  %v18 = vld [vmem:[%s1 + $0x10] sm:$0xff]
  %v19 = vld [vmem:[%s1 + $0x18] sm:$0xff]
  %v20 = vld [vmem:[%s1 + $0x20] sm:$0xff]
  %v21 = vld [vmem:[%s1 + $0x28] sm:$0xff]
  %v22 = vld [vmem:[%s1 + $0x30] sm:$0xff]
  %v23 = vld [vmem:[%s1 + $0x38] sm:$0xff]
  %v24 = vld [vmem:[%s1 + $0x40] sm:$0xff]
  %v25 = vld [vmem:[%s1 + $0x48] sm:$0xff]
  %v26 = vld [vmem:[%s1 + $0x50] sm:$0xff]
  %v27 = vld [vmem:[%s1 + $0x58] sm:$0xff]
  %v28 = vld [vmem:[%s1 + $0x60] sm:$0xff]
  %v29 = vld [vmem:[%s1 + $0x68] sm:$0xff]
  %v30 = vld [vmem:[%s1 + $0x70] sm:$0xff]
  %v31 = vld [vmem:[%s1 + $0x78] sm:$0xff]
  %v32 = vld [vmem:[%s2] sm:$0xff]
  %v33 = vld [vmem:[%s0] sm:$0xff]
  %34 = vmatprep.subr.mxu0 0.0
  %35 = vmatpush1.msra.mxu0 %v16
  %36 = vmatprep.subr.mxu0 0.0
  %37 = vmatpush1.msra.mxu0 %v17
  %38 = vmatprep.subr.mxu0 0.0
  %39 = vmatpush1.msra.mxu0 %v18
  %40 = vmatprep.subr.mxu0 0.0
  %41 = vmatpush1.msra.mxu0 %v19
  %42 = vmatprep.subr.mxu0 0.0
  %43 = vmatpush1.msra.mxu0 %v20
  %44 = vmatprep.subr.mxu0 0.0
  %45 = vmatpush1.msra.mxu0 %v21
  %46 = vmatprep.subr.mxu0 0.0
  %47 = vmatpush1.msra.mxu0 %v22
  %48 = vmatprep.subr.mxu0 0.0
  %49 = vmatpush1.msra.mxu0 %v23
  %50 = vmatprep.subr.mxu0 0.0
  %51 = vmatpush1.msra.mxu0 %v24
  %52 = vmatprep.subr.mxu0 0.0
  %53 = vmatpush1.msra.mxu0 %v25
  %54 = vmatprep.subr.mxu0 0.0
  %55 = vmatpush1.msra.mxu0 %v26
  %56 = vmatprep.subr.mxu0 0.0
  %57 = vmatpush1.msra.mxu0 %v27
  %58 = vmatprep.subr.mxu0 0.0
  %59 = vmatpush1.msra.mxu0 %v28
  %60 = vmatprep.subr.mxu0 0.0
  %61 = vmatpush1.msra.mxu0 %v29
  %62 = vmatprep.subr.mxu0 0.0
  %63 = vmatpush1.msra.mxu0 %v30
  %64 = vmatprep.subr.mxu0 0.0
  %65 = vmatpush1.msra.mxu0 %v31
  %66 = vmatprep.subr.mxu0 0.0
  %67 = vmatpush1.msra.mxu0 0.0
  %68 = vmatprep.subr.mxu0 0.0
  %69 = vmatpush1.msra.mxu0 0.0
  %70 = vmatprep.subr.mxu0 0.0
  %71 = vmatpush1.msra.mxu0 0.0
  %72 = vmatprep.subr.mxu0 0.0
  %73 = vmatpush1.msra.mxu0 0.0
  %74 = vmatprep.subr.mxu0 0.0
  %75 = vmatpush1.msra.mxu0 0.0
  %76 = vmatprep.subr.mxu0 0.0
  %77 = vmatpush1.msra.mxu0 0.0
  %78 = vmatprep.subr.mxu0 0.0
  %79 = vmatpush1.msra.mxu0 0.0
  %80 = vmatprep.subr.mxu0 0.0
  %81 = vmatpush1.msra.mxu0 0.0
  %82 = vmatprep.subr.mxu0 0.0
  %83 = vmatpush1.msra.mxu0 0.0
  %84 = vmatprep.subr.mxu0 0.0
  %85 = vmatpush1.msra.mxu0 0.0
  %86 = vmatprep.subr.mxu0 0.0
  %87 = vmatpush1.msra.mxu0 0.0
  %88 = vmatprep.subr.mxu0 0.0
  %89 = vmatpush1.msra.mxu0 0.0
  %90 = vmatprep.subr.mxu0 0.0
  %91 = vmatpush1.msra.mxu0 0.0
  %92 = vmatprep.subr.mxu0 0.0
  %93 = vmatpush1.msra.mxu0 0.0
  %94 = vmatprep.subr.mxu0 0.0
  %95 = vmatpush1.msra.mxu0 0.0
  %96 = vmatprep.subr.mxu0 0.0
  %97 = vmatpush1.msra.mxu0 0.0
  %98 = vmatprep.mubr.f32.mxu0 0.0
  %99 = vmatmul.mubr.f32.gmra.mrb[0].mxu0 %v32
  %v100 = vpop.f32.mrb[0].mxu0
  %v101 = vadd.f32 0.0, %v100
  %v102 = vpop.f32.mrb[0].mxu0
  %103 = vdwg.mxu0
  %v104 = vadd.f32 %v33, %v101
  %v105 = vtanh.pop %v104
  %s106 = scalar_lea.vmem %s0, 8
  %v107 = vld [vmem:[%s106] sm:$0xff]
  %108 = vmatprep.subr.mxu0 0.0
  %109 = vmatpush1.msra.mxu0 %v16
  %110 = vmatprep.subr.mxu0 0.0
  %111 = vmatpush1.msra.mxu0 %v17
  %112 = vmatprep.subr.mxu0 0.0
  %113 = vmatpush1.msra.mxu0 %v18
  %114 = vmatprep.subr.mxu0 0.0
  %115 = vmatpush1.msra.mxu0 %v19
  %116 = vmatprep.subr.mxu0 0.0
  %117 = vmatpush1.msra.mxu0 %v20
  %118 = vmatprep.subr.mxu0 0.0
  %119 = vmatpush1.msra.mxu0 %v21
  %120 = vmatprep.subr.mxu0 0.0
  %121 = vmatpush1.msra.mxu0 %v22
  %122 = vmatprep.subr.mxu0 0.0
  %123 = vmatpush1.msra.mxu0 %v23
  %124 = vmatprep.subr.mxu0 0.0
  %125 = vmatpush1.msra.mxu0 %v24
  %126 = vmatprep.subr.mxu0 0.0
  %127 = vmatpush1.msra.mxu0 %v25
  %128 = vmatprep.subr.mxu0 0.0
  %129 = vmatpush1.msra.mxu0 %v26
  %130 = vmatprep.subr.mxu0 0.0
  %131 = vmatpush1.msra.mxu0 %v27
  %132 = vmatprep.subr.mxu0 0.0
  %133 = vmatpush1.msra.mxu0 %v28
  %134 = vmatprep.subr.mxu0 0.0
  %135 = vmatpush1.msra.mxu0 %v29
  %136 = vmatprep.subr.mxu0 0.0
  %137 = vmatpush1.msra.mxu0 %v30
  %138 = vmatprep.subr.mxu0 0.0
  %139 = vmatpush1.msra.mxu0 %v31
  %140 = vmatprep.subr.mxu0 0.0
  %141 = vmatpush1.msra.mxu0 0.0
  %142 = vmatprep.subr.mxu0 0.0
  %143 = vmatpush1.msra.mxu0 0.0
  %144 = vmatprep.subr.mxu0 0.0
  %145 = vmatpush1.msra.mxu0 0.0
  %146 = vmatprep.subr.mxu0 0.0
  %147 = vmatpush1.msra.mxu0 0.0
  %148 = vmatprep.subr.mxu0 0.0
  %149 = vmatpush1.msra.mxu0 0.0
  %150 = vmatprep.subr.mxu0 0.0
  %151 = vmatpush1.msra.mxu0 0.0
  %152 = vmatprep.subr.mxu0 0.0
  %153 = vmatpush1.msra.mxu0 0.0
  %154 = vmatprep.subr.mxu0 0.0
  %155 = vmatpush1.msra.mxu0 0.0
  %156 = vmatprep.subr.mxu0 0.0
  %157 = vmatpush1.msra.mxu0 0.0
  %158 = vmatprep.subr.mxu0 0.0
  %159 = vmatpush1.msra.mxu0 0.0
  %160 = vmatprep.subr.mxu0 0.0
  %161 = vmatpush1.msra.mxu0 0.0
  %162 = vmatprep.subr.mxu0 0.0
  %163 = vmatpush1.msra.mxu0 0.0
  %164 = vmatprep.subr.mxu0 0.0
  %165 = vmatpush1.msra.mxu0 0.0
  %166 = vmatprep.subr.mxu0 0.0
  %167 = vmatpush1.msra.mxu0 0.0
  %168 = vmatprep.subr.mxu0 0.0
  %169 = vmatpush1.msra.mxu0 0.0
  %170 = vmatprep.subr.mxu0 0.0
  %171 = vmatpush1.msra.mxu0 0.0
  %172 = vmatprep.mubr.f32.mxu0 0.0
  %173 = vmatmul.mubr.f32.gmra.mrb[0].mxu0 %v105
  %v174 = vpop.f32.mrb[0].mxu0
  %v175 = vadd.f32 0.0, %v174
  %v176 = vpop.f32.mrb[0].mxu0
  %177 = vdwg.mxu0
  %v178 = vadd.f32 %v107, %v175
  %v179 = vtanh.pop %v178
  %s180 = scalar_lea.vmem %s0, 16
  %v181 = vld [vmem:[%s180] sm:$0xff]
  %182 = vmatprep.subr.mxu0 0.0
  %183 = vmatpush1.msra.mxu0 %v16
  %184 = vmatprep.subr.mxu0 0.0
  %185 = vmatpush1.msra.mxu0 %v17
  %186 = vmatprep.subr.mxu0 0.0
  %187 = vmatpush1.msra.mxu0 %v18
  %188 = vmatprep.subr.mxu0 0.0
  %189 = vmatpush1.msra.mxu0 %v19
  %190 = vmatprep.subr.mxu0 0.0
  %191 = vmatpush1.msra.mxu0 %v20
  %192 = vmatprep.subr.mxu0 0.0
  %193 = vmatpush1.msra.mxu0 %v21
  %194 = vmatprep.subr.mxu0 0.0
  %195 = vmatpush1.msra.mxu0 %v22
  %196 = vmatprep.subr.mxu0 0.0
  %197 = vmatpush1.msra.mxu0 %v23
  %198 = vmatprep.subr.mxu0 0.0
  %199 = vmatpush1.msra.mxu0 %v24
  %200 = vmatprep.subr.mxu0 0.0
  %201 = vmatpush1.msra.mxu0 %v25
  %202 = vmatprep.subr.mxu0 0.0
  %203 = vmatpush1.msra.mxu0 %v26
  %204 = vmatprep.subr.mxu0 0.0
  %205 = vmatpush1.msra.mxu0 %v27
  %206 = vmatprep.subr.mxu0 0.0
  %207 = vmatpush1.msra.mxu0 %v28
  %208 = vmatprep.subr.mxu0 0.0
  %209 = vmatpush1.msra.mxu0 %v29
  %210 = vmatprep.subr.mxu0 0.0
  %211 = vmatpush1.msra.mxu0 %v30
  %212 = vmatprep.subr.mxu0 0.0
  %213 = vmatpush1.msra.mxu0 %v31
  %214 = vmatprep.subr.mxu0 0.0
  %215 = vmatpush1.msra.mxu0 0.0
  %216 = vmatprep.subr.mxu0 0.0
  %217 = vmatpush1.msra.mxu0 0.0
  %218 = vmatprep.subr.mxu0 0.0
  %219 = vmatpush1.msra.mxu0 0.0
  %220 = vmatprep.subr.mxu0 0.0
  %221 = vmatpush1.msra.mxu0 0.0
  %222 = vmatprep.subr.mxu0 0.0
  %223 = vmatpush1.msra.mxu0 0.0
  %224 = vmatprep.subr.mxu0 0.0
  %225 = vmatpush1.msra.mxu0 0.0
  %226 = vmatprep.subr.mxu0 0.0
  %227 = vmatpush1.msra.mxu0 0.0
  %228 = vmatprep.subr.mxu0 0.0
  %229 = vmatpush1.msra.mxu0 0.0
  %230 = vmatprep.subr.mxu0 0.0
  %231 = vmatpush1.msra.mxu0 0.0
  %232 = vmatprep.subr.mxu0 0.0
  %233 = vmatpush1.msra.mxu0 0.0
  %234 = vmatprep.subr.mxu0 0.0
  %235 = vmatpush1.msra.mxu0 0.0
  %236 = vmatprep.subr.mxu0 0.0
  %237 = vmatpush1.msra.mxu0 0.0
  %238 = vmatprep.subr.mxu0 0.0
  %239 = vmatpush1.msra.mxu0 0.0
  %240 = vmatprep.subr.mxu0 0.0
  %241 = vmatpush1.msra.mxu0 0.0
  %242 = vmatprep.subr.mxu0 0.0
  %243 = vmatpush1.msra.mxu0 0.0
  %244 = vmatprep.subr.mxu0 0.0
  %245 = vmatpush1.msra.mxu0 0.0
  %246 = vmatprep.mubr.f32.mxu0 0.0
  %247 = vmatmul.mubr.f32.gmra.mrb[0].mxu0 %v179
  %v248 = vpop.f32.mrb[0].mxu0
  %v249 = vadd.f32 0.0, %v248
  %v250 = vpop.f32.mrb[0].mxu0
  %251 = vdwg.mxu0
  %v252 = vadd.f32 %v181, %v249
  %v253 = vtanh.pop %v252
  %s254 = scalar_lea.vmem %s0, 24
  %v255 = vld [vmem:[%s254] sm:$0xff]
  %256 = vmatprep.subr.mxu0 0.0
  %257 = vmatpush1.msra.mxu0 %v16
  %258 = vmatprep.subr.mxu0 0.0
  %259 = vmatpush1.msra.mxu0 %v17
  %260 = vmatprep.subr.mxu0 0.0
  %261 = vmatpush1.msra.mxu0 %v18
  %262 = vmatprep.subr.mxu0 0.0
  %263 = vmatpush1.msra.mxu0 %v19
  %264 = vmatprep.subr.mxu0 0.0
  %265 = vmatpush1.msra.mxu0 %v20
  %266 = vmatprep.subr.mxu0 0.0
  %267 = vmatpush1.msra.mxu0 %v21
  %268 = vmatprep.subr.mxu0 0.0
  %269 = vmatpush1.msra.mxu0 %v22
  %270 = vmatprep.subr.mxu0 0.0
  %271 = vmatpush1.msra.mxu0 %v23
  %272 = vmatprep.subr.mxu0 0.0
  %273 = vmatpush1.msra.mxu0 %v24
  %274 = vmatprep.subr.mxu0 0.0
  %275 = vmatpush1.msra.mxu0 %v25
  %276 = vmatprep.subr.mxu0 0.0
  %277 = vmatpush1.msra.mxu0 %v26
  %278 = vmatprep.subr.mxu0 0.0
  %279 = vmatpush1.msra.mxu0 %v27
  %280 = vmatprep.subr.mxu0 0.0
  %281 = vmatpush1.msra.mxu0 %v28
  %282 = vmatprep.subr.mxu0 0.0
  %283 = vmatpush1.msra.mxu0 %v29
  %284 = vmatprep.subr.mxu0 0.0
  %285 = vmatpush1.msra.mxu0 %v30
  %286 = vmatprep.subr.mxu0 0.0
  %287 = vmatpush1.msra.mxu0 %v31
  %288 = vmatprep.subr.mxu0 0.0
  %289 = vmatpush1.msra.mxu0 0.0
  %290 = vmatprep.subr.mxu0 0.0
  %291 = vmatpush1.msra.mxu0 0.0
  %292 = vmatprep.subr.mxu0 0.0
  %293 = vmatpush1.msra.mxu0 0.0
  %294 = vmatprep.subr.mxu0 0.0
  %295 = vmatpush1.msra.mxu0 0.0
  %296 = vmatprep.subr.mxu0 0.0
  %297 = vmatpush1.msra.mxu0 0.0
  %298 = vmatprep.subr.mxu0 0.0
  %299 = vmatpush1.msra.mxu0 0.0
  %300 = vmatprep.subr.mxu0 0.0
  %301 = vmatpush1.msra.mxu0 0.0
  %302 = vmatprep.subr.mxu0 0.0
  %303 = vmatpush1.msra.mxu0 0.0
  %304 = vmatprep.subr.mxu0 0.0
  %305 = vmatpush1.msra.mxu0 0.0
  %306 = vmatprep.subr.mxu0 0.0
  %307 = vmatpush1.msra.mxu0 0.0
  %308 = vmatprep.subr.mxu0 0.0
  %309 = vmatpush1.msra.mxu0 0.0
  %310 = vmatprep.subr.mxu0 0.0
  %311 = vmatpush1.msra.mxu0 0.0
  %312 = vmatprep.subr.mxu0 0.0
  %313 = vmatpush1.msra.mxu0 0.0
  %314 = vmatprep.subr.mxu0 0.0
  %315 = vmatpush1.msra.mxu0 0.0
  %316 = vmatprep.subr.mxu0 0.0
  %317 = vmatpush1.msra.mxu0 0.0
  %318 = vmatprep.subr.mxu0 0.0
  %319 = vmatpush1.msra.mxu0 0.0
  %320 = vmatprep.mubr.f32.mxu0 0.0
  %321 = vmatmul.mubr.f32.gmra.mrb[0].mxu0 %v253
  %v322 = vpop.f32.mrb[0].mxu0
  %v323 = vadd.f32 0.0, %v322
  %v324 = vpop.f32.mrb[0].mxu0
  %325 = vdwg.mxu0
  %v326 = vadd.f32 %v255, %v323
  %v327 = vtanh.pop %v326
  %s328 = scalar_lea.vmem %s0, 32
  %v329 = vld [vmem:[%s328] sm:$0xff]
  %330 = vmatprep.subr.mxu0 0.0
  %331 = vmatpush1.msra.mxu0 %v16
  %332 = vmatprep.subr.mxu0 0.0
  %333 = vmatpush1.msra.mxu0 %v17
  %334 = vmatprep.subr.mxu0 0.0
  %335 = vmatpush1.msra.mxu0 %v18
  %336 = vmatprep.subr.mxu0 0.0
  %337 = vmatpush1.msra.mxu0 %v19
  %338 = vmatprep.subr.mxu0 0.0
  %339 = vmatpush1.msra.mxu0 %v20
  %340 = vmatprep.subr.mxu0 0.0
  %341 = vmatpush1.msra.mxu0 %v21
  %342 = vmatprep.subr.mxu0 0.0
  %343 = vmatpush1.msra.mxu0 %v22
  %344 = vmatprep.subr.mxu0 0.0
  %345 = vmatpush1.msra.mxu0 %v23
  %346 = vmatprep.subr.mxu0 0.0
  %347 = vmatpush1.msra.mxu0 %v24
  %348 = vmatprep.subr.mxu0 0.0
  %349 = vmatpush1.msra.mxu0 %v25
  %350 = vmatprep.subr.mxu0 0.0
  %351 = vmatpush1.msra.mxu0 %v26
  %352 = vmatprep.subr.mxu0 0.0
  %353 = vmatpush1.msra.mxu0 %v27
  %354 = vmatprep.subr.mxu0 0.0
  %355 = vmatpush1.msra.mxu0 %v28
  %356 = vmatprep.subr.mxu0 0.0
  %357 = vmatpush1.msra.mxu0 %v29
  %358 = vmatprep.subr.mxu0 0.0
  %359 = vmatpush1.msra.mxu0 %v30
  %360 = vmatprep.subr.mxu0 0.0
  %361 = vmatpush1.msra.mxu0 %v31
  %362 = vmatprep.subr.mxu0 0.0
  %363 = vmatpush1.msra.mxu0 0.0
  %364 = vmatprep.subr.mxu0 0.0
  %365 = vmatpush1.msra.mxu0 0.0
  %366 = vmatprep.subr.mxu0 0.0
  %367 = vmatpush1.msra.mxu0 0.0
  %368 = vmatprep.subr.mxu0 0.0
  %369 = vmatpush1.msra.mxu0 0.0
  %370 = vmatprep.subr.mxu0 0.0
  %371 = vmatpush1.msra.mxu0 0.0
  %372 = vmatprep.subr.mxu0 0.0
  %373 = vmatpush1.msra.mxu0 0.0
  %374 = vmatprep.subr.mxu0 0.0
  %375 = vmatpush1.msra.mxu0 0.0
  %376 = vmatprep.subr.mxu0 0.0
  %377 = vmatpush1.msra.mxu0 0.0
  %378 = vmatprep.subr.mxu0 0.0
  %379 = vmatpush1.msra.mxu0 0.0
  %380 = vmatprep.subr.mxu0 0.0
  %381 = vmatpush1.msra.mxu0 0.0
  %382 = vmatprep.subr.mxu0 0.0
  %383 = vmatpush1.msra.mxu0 0.0
  %384 = vmatprep.subr.mxu0 0.0
  %385 = vmatpush1.msra.mxu0 0.0
  %386 = vmatprep.subr.mxu0 0.0
  %387 = vmatpush1.msra.mxu0 0.0
  %388 = vmatprep.subr.mxu0 0.0
  %389 = vmatpush1.msra.mxu0 0.0
  %390 = vmatprep.subr.mxu0 0.0
  %391 = vmatpush1.msra.mxu0 0.0
  %392 = vmatprep.subr.mxu0 0.0
  %393 = vmatpush1.msra.mxu0 0.0
  %394 = vmatprep.mubr.f32.mxu0 0.0
  %395 = vmatmul.mubr.f32.gmra.mrb[0].mxu0 %v327
  %v396 = vpop.f32.mrb[0].mxu0
  %v397 = vadd.f32 0.0, %v396
  %v398 = vpop.f32.mrb[0].mxu0
  %399 = vdwg.mxu0
  %v400 = vadd.f32 %v329, %v397
  %v401 = vtanh.pop %v400
  %s402 = scalar_lea.vmem %s0, 40
  %v403 = vld [vmem:[%s402] sm:$0xff]
  %404 = vmatprep.subr.mxu0 0.0
  %405 = vmatpush1.msra.mxu0 %v16
  %406 = vmatprep.subr.mxu0 0.0
  %407 = vmatpush1.msra.mxu0 %v17
  %408 = vmatprep.subr.mxu0 0.0
  %409 = vmatpush1.msra.mxu0 %v18
  %410 = vmatprep.subr.mxu0 0.0
  %411 = vmatpush1.msra.mxu0 %v19
  %412 = vmatprep.subr.mxu0 0.0
  %413 = vmatpush1.msra.mxu0 %v20
  %414 = vmatprep.subr.mxu0 0.0
  %415 = vmatpush1.msra.mxu0 %v21
  %416 = vmatprep.subr.mxu0 0.0
  %417 = vmatpush1.msra.mxu0 %v22
  %418 = vmatprep.subr.mxu0 0.0
  %419 = vmatpush1.msra.mxu0 %v23
  %420 = vmatprep.subr.mxu0 0.0
  %421 = vmatpush1.msra.mxu0 %v24
  %422 = vmatprep.subr.mxu0 0.0
  %423 = vmatpush1.msra.mxu0 %v25
  %424 = vmatprep.subr.mxu0 0.0
  %425 = vmatpush1.msra.mxu0 %v26
  %426 = vmatprep.subr.mxu0 0.0
  %427 = vmatpush1.msra.mxu0 %v27
  %428 = vmatprep.subr.mxu0 0.0
  %429 = vmatpush1.msra.mxu0 %v28
  %430 = vmatprep.subr.mxu0 0.0
  %431 = vmatpush1.msra.mxu0 %v29
  %432 = vmatprep.subr.mxu0 0.0
  %433 = vmatpush1.msra.mxu0 %v30
  %434 = vmatprep.subr.mxu0 0.0
  %435 = vmatpush1.msra.mxu0 %v31
  %436 = vmatprep.subr.mxu0 0.0
  %437 = vmatpush1.msra.mxu0 0.0
  %438 = vmatprep.subr.mxu0 0.0
  %439 = vmatpush1.msra.mxu0 0.0
  %440 = vmatprep.subr.mxu0 0.0
  %441 = vmatpush1.msra.mxu0 0.0
  %442 = vmatprep.subr.mxu0 0.0
  %443 = vmatpush1.msra.mxu0 0.0
  %444 = vmatprep.subr.mxu0 0.0
  %445 = vmatpush1.msra.mxu0 0.0
  %446 = vmatprep.subr.mxu0 0.0
  %447 = vmatpush1.msra.mxu0 0.0
  %448 = vmatprep.subr.mxu0 0.0
  %449 = vmatpush1.msra.mxu0 0.0
  %450 = vmatprep.subr.mxu0 0.0
  %451 = vmatpush1.msra.mxu0 0.0
  %452 = vmatprep.subr.mxu0 0.0
  %453 = vmatpush1.msra.mxu0 0.0
  %454 = vmatprep.subr.mxu0 0.0
  %455 = vmatpush1.msra.mxu0 0.0
  %456 = vmatprep.subr.mxu0 0.0
  %457 = vmatpush1.msra.mxu0 0.0
  %458 = vmatprep.subr.mxu0 0.0
  %459 = vmatpush1.msra.mxu0 0.0
  %460 = vmatprep.subr.mxu0 0.0
  %461 = vmatpush1.msra.mxu0 0.0
  %462 = vmatprep.subr.mxu0 0.0
  %463 = vmatpush1.msra.mxu0 0.0
  %464 = vmatprep.subr.mxu0 0.0
  %465 = vmatpush1.msra.mxu0 0.0
  %466 = vmatprep.subr.mxu0 0.0
  %467 = vmatpush1.msra.mxu0 0.0
  %468 = vmatprep.mubr.f32.mxu0 0.0
  %469 = vmatmul.mubr.f32.gmra.mrb[0].mxu0 %v401
  %v470 = vpop.f32.mrb[0].mxu0
  %v471 = vadd.f32 0.0, %v470
  %v472 = vpop.f32.mrb[0].mxu0
  %473 = vdwg.mxu0
  %v474 = vadd.f32 %v403, %v471
  %v475 = vtanh.pop %v474
  %s476 = scalar_lea.vmem %s0, 48
  %v477 = vld [vmem:[%s476] sm:$0xff]
  %478 = vmatprep.subr.mxu0 0.0
  %479 = vmatpush1.msra.mxu0 %v16
  %480 = vmatprep.subr.mxu0 0.0
  %481 = vmatpush1.msra.mxu0 %v17
  %482 = vmatprep.subr.mxu0 0.0
  %483 = vmatpush1.msra.mxu0 %v18
  %484 = vmatprep.subr.mxu0 0.0
  %485 = vmatpush1.msra.mxu0 %v19
  %486 = vmatprep.subr.mxu0 0.0
  %487 = vmatpush1.msra.mxu0 %v20
  %488 = vmatprep.subr.mxu0 0.0
  %489 = vmatpush1.msra.mxu0 %v21
  %490 = vmatprep.subr.mxu0 0.0
  %491 = vmatpush1.msra.mxu0 %v22
  %492 = vmatprep.subr.mxu0 0.0
  %493 = vmatpush1.msra.mxu0 %v23
  %494 = vmatprep.subr.mxu0 0.0
  %495 = vmatpush1.msra.mxu0 %v24
  %496 = vmatprep.subr.mxu0 0.0
  %497 = vmatpush1.msra.mxu0 %v25
  %498 = vmatprep.subr.mxu0 0.0
  %499 = vmatpush1.msra.mxu0 %v26
  %500 = vmatprep.subr.mxu0 0.0
  %501 = vmatpush1.msra.mxu0 %v27
  %502 = vmatprep.subr.mxu0 0.0
  %503 = vmatpush1.msra.mxu0 %v28
  %504 = vmatprep.subr.mxu0 0.0
  %505 = vmatpush1.msra.mxu0 %v29
  %506 = vmatprep.subr.mxu0 0.0
  %507 = vmatpush1.msra.mxu0 %v30
  %508 = vmatprep.subr.mxu0 0.0
  %509 = vmatpush1.msra.mxu0 %v31
  %510 = vmatprep.subr.mxu0 0.0
  %511 = vmatpush1.msra.mxu0 0.0
  %512 = vmatprep.subr.mxu0 0.0
  %513 = vmatpush1.msra.mxu0 0.0
  %514 = vmatprep.subr.mxu0 0.0
  %515 = vmatpush1.msra.mxu0 0.0
  %516 = vmatprep.subr.mxu0 0.0
  %517 = vmatpush1.msra.mxu0 0.0
  %518 = vmatprep.subr.mxu0 0.0
  %519 = vmatpush1.msra.mxu0 0.0
  %520 = vmatprep.subr.mxu0 0.0
  %521 = vmatpush1.msra.mxu0 0.0
  %522 = vmatprep.subr.mxu0 0.0
  %523 = vmatpush1.msra.mxu0 0.0
  %524 = vmatprep.subr.mxu0 0.0
  %525 = vmatpush1.msra.mxu0 0.0
  %526 = vmatprep.subr.mxu0 0.0
  %527 = vmatpush1.msra.mxu0 0.0
  %528 = vmatprep.subr.mxu0 0.0
  %529 = vmatpush1.msra.mxu0 0.0
  %530 = vmatprep.subr.mxu0 0.0
  %531 = vmatpush1.msra.mxu0 0.0
  %532 = vmatprep.subr.mxu0 0.0
  %533 = vmatpush1.msra.mxu0 0.0
  %534 = vmatprep.subr.mxu0 0.0
  %535 = vmatpush1.msra.mxu0 0.0
  %536 = vmatprep.subr.mxu0 0.0
  %537 = vmatpush1.msra.mxu0 0.0
  %538 = vmatprep.subr.mxu0 0.0
  %539 = vmatpush1.msra.mxu0 0.0
  %540 = vmatprep.subr.mxu0 0.0
  %541 = vmatpush1.msra.mxu0 0.0
  %542 = vmatprep.mubr.f32.mxu0 0.0
  %543 = vmatmul.mubr.f32.gmra.mrb[0].mxu0 %v475
  %v544 = vpop.f32.mrb[0].mxu0
  %v545 = vadd.f32 0.0, %v544
  %v546 = vpop.f32.mrb[0].mxu0
  %547 = vdwg.mxu0
  %v548 = vadd.f32 %v477, %v545
  %v549 = vtanh.pop %v548
  %s550 = scalar_lea.vmem %s0, 56
  %v551 = vld [vmem:[%s550] sm:$0xff]
  %552 = vmatprep.subr.mxu0 0.0
  %553 = vmatpush1.msra.mxu0 %v16
  %554 = vmatprep.subr.mxu0 0.0
  %555 = vmatpush1.msra.mxu0 %v17
  %556 = vmatprep.subr.mxu0 0.0
  %557 = vmatpush1.msra.mxu0 %v18
  %558 = vmatprep.subr.mxu0 0.0
  %559 = vmatpush1.msra.mxu0 %v19
  %560 = vmatprep.subr.mxu0 0.0
  %561 = vmatpush1.msra.mxu0 %v20
  %562 = vmatprep.subr.mxu0 0.0
  %563 = vmatpush1.msra.mxu0 %v21
  %564 = vmatprep.subr.mxu0 0.0
  %565 = vmatpush1.msra.mxu0 %v22
  %566 = vmatprep.subr.mxu0 0.0
  %567 = vmatpush1.msra.mxu0 %v23
  %568 = vmatprep.subr.mxu0 0.0
  %569 = vmatpush1.msra.mxu0 %v24
  %570 = vmatprep.subr.mxu0 0.0
  %571 = vmatpush1.msra.mxu0 %v25
  %572 = vmatprep.subr.mxu0 0.0
  %573 = vmatpush1.msra.mxu0 %v26
  %574 = vmatprep.subr.mxu0 0.0
  %575 = vmatpush1.msra.mxu0 %v27
  %576 = vmatprep.subr.mxu0 0.0
  %577 = vmatpush1.msra.mxu0 %v28
  %578 = vmatprep.subr.mxu0 0.0
  %579 = vmatpush1.msra.mxu0 %v29
  %580 = vmatprep.subr.mxu0 0.0
  %581 = vmatpush1.msra.mxu0 %v30
  %582 = vmatprep.subr.mxu0 0.0
  %583 = vmatpush1.msra.mxu0 %v31
  %584 = vmatprep.subr.mxu0 0.0
  %585 = vmatpush1.msra.mxu0 0.0
  %586 = vmatprep.subr.mxu0 0.0
  %587 = vmatpush1.msra.mxu0 0.0
  %588 = vmatprep.subr.mxu0 0.0
  %589 = vmatpush1.msra.mxu0 0.0
  %590 = vmatprep.subr.mxu0 0.0
  %591 = vmatpush1.msra.mxu0 0.0
  %592 = vmatprep.subr.mxu0 0.0
  %593 = vmatpush1.msra.mxu0 0.0
  %594 = vmatprep.subr.mxu0 0.0
  %595 = vmatpush1.msra.mxu0 0.0
  %596 = vmatprep.subr.mxu0 0.0
  %597 = vmatpush1.msra.mxu0 0.0
  %598 = vmatprep.subr.mxu0 0.0
  %599 = vmatpush1.msra.mxu0 0.0
  %600 = vmatprep.subr.mxu0 0.0
  %601 = vmatpush1.msra.mxu0 0.0
  %602 = vmatprep.subr.mxu0 0.0
  %603 = vmatpush1.msra.mxu0 0.0
  %604 = vmatprep.subr.mxu0 0.0
  %605 = vmatpush1.msra.mxu0 0.0
  %606 = vmatprep.subr.mxu0 0.0
  %607 = vmatpush1.msra.mxu0 0.0
  %608 = vmatprep.subr.mxu0 0.0
  %609 = vmatpush1.msra.mxu0 0.0
  %610 = vmatprep.subr.mxu0 0.0
  %611 = vmatpush1.msra.mxu0 0.0
  %612 = vmatprep.subr.mxu0 0.0
  %613 = vmatpush1.msra.mxu0 0.0
  %614 = vmatprep.subr.mxu0 0.0
  %615 = vmatpush1.msra.mxu0 0.0
  %616 = vmatprep.mubr.f32.mxu0 0.0
  %617 = vmatmul.mubr.f32.gmra.mrb[0].mxu0 %v549
  %v618 = vpop.f32.mrb[0].mxu0
  %v619 = vadd.f32 0.0, %v618
  %v620 = vpop.f32.mrb[0].mxu0
  %621 = vdwg.mxu0
  %v622 = vadd.f32 %v551, %v619
  %v623 = vtanh.pop %v622
  %624 = vst [vmem:[%s2] sm:$0xff] %v623
  // Predicated region
  $region14: #{rnn_language_model_forward.4} parent=0 // pred_check
    _
  $region15: #{rnn_language_model_forward.4} parent=0 // pred_check_branch
    %626 = sbr.rel (0) target = $region17
  $region16: #{rnn_language_model_forward.4} parent=0 // pred_region
    _
  $region17: #{rnn_language_model_forward.4} parent=0 // pred_fallthru
    _
  // Predicated region
  $region18: #{rnn_language_model_forward.4} parent=0 // pred_check
    _
  $region19: #{rnn_language_model_forward.4} parent=0 // pred_check_branch
    %628 = sbr.rel (0) target = $region21
  $region20: #{rnn_language_model_forward.4} parent=0 // pred_region
    _
  $region21: #{rnn_language_model_forward.4} parent=0 // pred_fallthru
    _

</llo_original>
